<compile_context>
chip_gen: v5e
topology: v5e:2x2
jax: 0.10.0
libtpu: 0.0.40
codegen_flags: <defaults>
</compile_context>

<pallas_src>
import functools

import jax
import jax.numpy as jnp
from jax.experimental import pallas as pl
from jax.experimental.pallas import tpu as pltpu


def _round_up(x: int, m: int) -> int:
    return (x + m - 1) // m * m


def _vmem_limit_bytes() -> int:
    """Generation-aware VMEM budget: ~40 MiB on 64 MiB/TC parts (v7x), ~96 MiB on 128 MiB parts."""
    try:
        cap = getattr(pltpu.get_tpu_info(), "vmem_capacity_bytes", None)
    except Exception:
        cap = None
    if cap is None or cap <= 64 * 1024 * 1024:
        return 40 * 1024 * 1024
    return 96 * 1024 * 1024


def _pick_tile(dim_pad: int, cap: int) -> int:
    """Largest lane-dense tile (multiple of 128, <= cap) that divides dim_pad."""
    if dim_pad <= cap:
        return dim_pad
    for t in (1024, 512, 256, 128):
        if t <= cap and dim_pad % t == 0:
            return t
    return 128


# ---------------------------------------------------------------------------
# Kernel 1: fully fused MLP (single pallas_call, activations resident in VMEM)
# ---------------------------------------------------------------------------
def _mlp_fused_kernel(x_ref, w_ref, b_ref, o_ref, act_ref, *,
                      final_relu_layer, num_layers, store_w, n_out_pad,
                      compute_dtype, resident):
    l = pl.program_id(1)

    @pl.when(l == 0)
    def _load_input():
        act_ref[...] = x_ref[...].astype(jnp.float32)

    # Pre-ReLU of layer l (nn.ReLU before Linear l iff l < final_relu_layer), folded into the
    # single activation load: max(x, 0) when active, max(x, -inf) == x otherwise.
    xin = act_ref[...]
    relu_floor = jnp.where(l < final_relu_layer, 0.0, -jnp.inf).astype(jnp.float32)
    xin = jnp.maximum(xin, relu_floor)

    # Weights pre-transposed to [din_pad, dout_pad] and stored in compute_dtype (bf16 default);
    # resident mode indexes the VMEM-resident stack, streamed mode gets one layer per grid step.
    w = w_ref[l] if resident else w_ref[0]
    y = jnp.dot(xin.astype(compute_dtype), w, preferred_element_type=jnp.float32)
    y = y + b_ref[0].astype(jnp.float32)              # bias kept in f32

    @pl.when(l < num_layers - 1)
    def _carry():                                      # last layer's activation store is dead
        act_ref[:, :store_w] = y[:, :store_w]

    @pl.when(l == num_layers - 1)
    def _store():
        o_ref[...] = y[:, :n_out_pad].astype(o_ref.dtype)


def _prep_fused(in_features, params, compute_dtype, resident):
    sizes = [int(in_features)] + [int(w_t.shape[1]) for (w_t, _) in params]
    num_layers = len(params)
    din_pad = _round_up(max(sizes[:-1]), 128)          # rectangular, not square, padding
    dout_pad = _round_up(max(sizes[1:]), 128)
    # Zero padding is exact: padded weight rows/cols and bias entries are zero, so padded
    # activation columns never contribute (stale columns hit zero weight rows next layer).
    w_stack = jnp.stack([
        jnp.pad(w_t, ((0, din_pad - w_t.shape[0]), (0, dout_pad - w_t.shape[1]))).astype(compute_dtype)
        for (w_t, _) in params])                       # [L, din_pad, dout_pad], compute dtype
    b_stack = jnp.stack([
        jnp.pad(b, (0, dout_pad - b.shape[0])).astype(jnp.float32).reshape(1, dout_pad)
        for (_, b) in params])                         # [L, 1, dout_pad], f32
    return dict(w=w_stack, b=b_stack, din_pad=din_pad, dout_pad=dout_pad,
                n_out=sizes[-1], n_out_pad=_round_up(sizes[-1], 128),
                num_layers=num_layers, resident=bool(resident))


def _run_fused(x, P, final_relu_layer, vmem_limit, compute_dtype):
    m, d_in = x.shape
    L, din_pad, dout_pad = P["num_layers"], P["din_pad"], P["dout_pad"]
    n_out_pad = P["n_out_pad"]
    # Single batch tile for small/medium batches (weights streamed at most once even when not
    # VMEM-resident); cap at 256 rows to fill the 256x256 MXU on v6e/v7x.
    tm = min(256, _round_up(m, 8))
    m_pad = _round_up(m, tm)
    x_p = jnp.pad(x, ((0, m_pad - m), (0, din_pad - d_in)))

    kernel = functools.partial(
        _mlp_fused_kernel, final_relu_layer=final_relu_layer, num_layers=L,
        store_w=min(din_pad, dout_pad), n_out_pad=n_out_pad,
        compute_dtype=compute_dtype, resident=P["resident"])

    if P["resident"]:
        # Constant index_map -> the whole weight stack is DMA'd once and stays VMEM-resident.
        w_spec = pl.BlockSpec((L, din_pad, dout_pad), lambda i, l: (0, 0, 0))
    else:
        w_spec = pl.BlockSpec((1, din_pad, dout_pad), lambda i, l: (l, 0, 0))

    out = pl.pallas_call(
        kernel,
        out_shape=jax.ShapeDtypeStruct((m_pad, n_out_pad), x.dtype),
        grid_spec=pltpu.PrefetchScalarGridSpec(
            num_scalar_prefetch=0,
            grid=(m_pad // tm, L),
            in_specs=[
                pl.BlockSpec((tm, din_pad), lambda i, l: (i, 0)),
                w_spec,
                pl.BlockSpec((1, 1, dout_pad), lambda i, l: (l, 0, 0)),
            ],
            out_specs=pl.BlockSpec((tm, n_out_pad), lambda i, l: (i, 0)),
            scratch_shapes=[pltpu.VMEM((tm, din_pad), jnp.float32)],
        ),
        compiler_params=pltpu.CompilerParams(
            dimension_semantics=("parallel", "arbitrary"),   # layer axis must stay sequential
            vmem_limit_bytes=vmem_limit,
        ),
    )(x_p, P["w"], P["b"])
    return out[:m, :P["n_out"]]


# ---------------------------------------------------------------------------
# Kernel 2: tiled per-layer Linear with (M, N, K) grid + f32 VMEM accumulator
# ---------------------------------------------------------------------------
def _linear_kernel(x_ref, w_ref, b_ref, o_ref, acc_ref, *, input_relu, output_relu, compute_dtype):
    k = pl.program_id(2)

    @pl.when(k == 0)
    def _zero():
        acc_ref[...] = jnp.zeros_like(acc_ref)

    x = x_ref[...]
    if input_relu:                    # only the first layer's raw input needs an in-kernel pre-ReLU
        x = jnp.maximum(x, 0.0)

    acc_ref[...] += jnp.dot(x.astype(compute_dtype), w_ref[...],
                            preferred_element_type=jnp.float32)

    @pl.when(k == pl.num_programs(2) - 1)
    def _epilogue():
        y = acc_ref[...] + b_ref[...].astype(jnp.float32)   # bias added once, on the last K step
        if output_relu:               # pre-ReLU of the NEXT layer, fused into this epilogue
            y = jnp.maximum(y, 0.0)
        o_ref[...] = y.astype(o_ref.dtype)


def _prep_layered(in_features, params, compute_dtype):
    layers = []
    din = int(in_features)
    for (w_t, b) in params:
        kdim, n = int(w_t.shape[0]), int(w_t.shape[1])
        assert kdim == din, f"layer input dim {kdim} != previous output dim {din}"
        k_pad, n_pad = _round_up(kdim, 128), _round_up(n, 128)
        tk = _pick_tile(k_pad, 1024)          # big lane-dense tiles (was 256)
        tn = _pick_tile(n_pad, 512)
        w_p = jnp.pad(w_t, ((0, k_pad - kdim), (0, n_pad - n))).astype(compute_dtype)
        b_p = jnp.pad(b, (0, n_pad - n)).astype(jnp.float32).reshape(1, n_pad)
        layers.append(dict(w=w_p, b=b_p, k=kdim, n=n, k_pad=k_pad, n_pad=n_pad, tk=tk, tn=tn))
        din = n
    return layers


def _run_layered(x, layers, final_relu_layer, vmem_limit, compute_dtype):
    m = x.shape[0]
    assert x.shape[1] == layers[0]["k"]
    tm = min(256, _round_up(m, 8))
    m_pad = _round_up(m, tm)
    # Pad once; padded activations flow between layers (prev n_pad == next k_pad by construction).
    act = jnp.pad(x, ((0, m_pad - m), (0, layers[0]["k_pad"] - x.shape[1])))

    for i, lyr in enumerate(layers):
        input_relu = (i == 0) and (0 < final_relu_layer)
        output_relu = (i + 1) < final_relu_layer
        kernel = functools.partial(_linear_kernel, input_relu=input_relu,
                                   output_relu=output_relu, compute_dtype=compute_dtype)
        act = pl.pallas_call(
            kernel,
            out_shape=jax.ShapeDtypeStruct((m_pad, lyr["n_pad"]), x.dtype),
            grid_spec=pltpu.PrefetchScalarGridSpec(
                num_scalar_prefetch=0,
                grid=(m_pad // tm, lyr["n_pad"] // lyr["tn"], lyr["k_pad"] // lyr["tk"]),
                in_specs=[
                    pl.BlockSpec((tm, lyr["tk"]), lambda bi, j, kk: (bi, kk)),
                    pl.BlockSpec((lyr["tk"], lyr["tn"]), lambda bi, j, kk: (kk, j)),
                    pl.BlockSpec((1, lyr["tn"]), lambda bi, j, kk: (0, j)),
                ],
                out_specs=pl.BlockSpec((tm, lyr["tn"]), lambda bi, j, kk: (bi, j)),
                scratch_shapes=[pltpu.VMEM((tm, lyr["tn"]), jnp.float32)],
            ),
            compiler_params=pltpu.CompilerParams(
                dimension_semantics=("parallel", "parallel", "arbitrary"),
                vmem_limit_bytes=vmem_limit,
            ),
        )(act, lyr["w"], lyr["b"])
    return act[:m, :layers[-1]["n"]]


# ---------------------------------------------------------------------------
# Builder (one-time parameter prep) + convenience wrapper
# ---------------------------------------------------------------------------
def make_mlp_forward(in_features, params, *, final_relu=False,
                     compute_dtype=jnp.bfloat16, fuse="auto", resident="auto"):
    """Pad/stack parameters once and return forward(x) reproducing MLP.forward."""
    num_layers = len(params)
    assert num_layers >= 1
    final_relu_layer = num_layers if final_relu else num_layers - 1

    vmem_limit = _vmem_limit_bytes()
    budget = int(0.85 * vmem_limit)

    sizes = [int(in_features)] + [int(w_t.shape[1]) for (w_t, _) in params]
    din_pad = _round_up(max(sizes[:-1]), 128)
    dout_pad = _round_up(max(sizes[1:]), 128)
    n_out_pad = _round_up(sizes[-1], 128)
    cd_bytes = jnp.dtype(compute_dtype).itemsize
    tm_cap = 256
    # non-weight VMEM: x block (x2) + act scratch + out block (x2) + bias blocks
    other = 4 * tm_cap * (3 * din_pad + 2 * n_out_pad) + 8 * num_layers * dout_pad
    w_all_bytes = num_layers * din_pad * dout_pad * cd_bytes
    w_one_bytes = din_pad * dout_pad * cd_bytes
    can_resident = (2 * w_all_bytes + other) <= budget
    can_streamed = (2 * w_one_bytes + other) <= budget
    pad_eff = sum(int(w_t.size) for (w_t, _) in params) / float(num_layers * din_pad * dout_pad)

    if resident == "auto":
        resident = can_resident
    if fuse == "auto":
        # Fuse when the weight stack can stay VMEM-resident, or when per-layer streaming fits and
        # rectangular padding is not too wasteful (very funnel-shaped nets go to the layered path).
        fuse = can_resident or (can_streamed and pad_eff >= 0.5)

    if fuse:
        P = _prep_fused(in_features, params, compute_dtype, resident)

        def forward(x):
            return _run_fused(x, P, final_relu_layer, vmem_limit, compute_dtype)
        return forward

    layers = _prep_layered(in_features, params, compute_dtype)

    def forward(x):
        return _run_layered(x, layers, final_relu_layer, vmem_limit, compute_dtype)
    return forward


def mlp_forward(x, params, *, final_relu=False, compute_dtype=jnp.bfloat16, fuse="auto"):
    """One-shot convenience wrapper.  For repeated calls build the forward once with
    make_mlp_forward so the parameter padding/stacking is hoisted out of the hot path."""
    return make_mlp_forward(x.shape[1], params, final_relu=final_relu,
                            compute_dtype=compute_dtype, fuse=fuse)(x)


# ---------------------------------------------------------------------------
# Params / reference
# ---------------------------------------------------------------------------
def init_mlp_params(key, layer_sizes):
    """Init mimicking nn.Linear(in, out); weights stored as w_t = weight.T ([din, dout])."""
    params = []
    for i in range(len(layer_sizes) - 1):
        din, dout = int(layer_sizes[i]), int(layer_sizes[i + 1])
        key, kw, kb = jax.random.split(key, 3)
        bound = 1.0 / (din ** 0.5)
        w_t = jax.random.uniform(kw, (din, dout), jnp.float32, -bound, bound)
        b = jax.random.uniform(kb, (dout,), jnp.float32, -bound, bound)
        params.append((w_t, b))
    return params


def mlp_reference(x, params, *, final_relu=False):
    num_layers = len(params)
    final_relu_layer = num_layers if final_relu else num_layers - 1
    out = x
    for i, (w_t, b) in enumerate(params):
        if i < final_relu_layer:
            out = jnp.maximum(out, 0.0)
        out = out @ w_t + b
    return out


if __name__ == "__main__":
    def _check(layer_sizes, batch, compute_dtype, tol):
        key = jax.random.PRNGKey(0)
        key, kx = jax.random.split(key)
        x = jax.random.normal(kx, (batch, layer_sizes[0]), jnp.float32)
        params = init_mlp_params(key, layer_sizes)
        for final_relu in (False, True):
            y_ref = mlp_reference(x, params, final_relu=final_relu)
            for fuse in ("auto", False):
                fwd = make_mlp_forward(layer_sizes[0], params, final_relu=final_relu,
                                       compute_dtype=compute_dtype, fuse=fuse)
                y = jax.block_until_ready(fwd(x))
                assert y.shape == (batch, layer_sizes[-1]), (y.shape, layer_sizes)
                max_err = float(jnp.max(jnp.abs(y - y_ref)))
                assert bool(jnp.allclose(y, y_ref, atol=tol, rtol=tol)), (
                    f"mismatch: sizes={layer_sizes} final_relu={final_relu} fuse={fuse} "
                    f"compute_dtype={compute_dtype} max_err={max_err}")
        return x, params

    # Small MLP like the triplet-loss metric-learning setup; exact f32 compute, tight tolerance.
    _check([32, 64, 48, 16], 4, jnp.float32, 1e-4)
    # Default bf16-on-MXU path (f32 accumulation) -- looser tolerance vs the f32 reference.
    _check([32, 64, 48, 16], 4, jnp.bfloat16, 5e-2)
    # Non-multiple-of-128 widths + multi-K-tile accumulation in the layered path.
    _check([200, 1300, 70], 36, jnp.float32, 2e-3)

    # Also exercise the streamed (non-resident) fused-weight path explicitly.
    key = jax.random.PRNGKey(0)
    key, kx = jax.random.split(key)
    x = jax.random.normal(kx, (4, 32), jnp.float32)
    params = init_mlp_params(key, [32, 64, 48, 16])
    fwd = make_mlp_forward(32, params, final_relu=True, compute_dtype=jnp.float32,
                           fuse=True, resident=False)
    y = jax.block_until_ready(fwd(x))
    y_ref = mlp_reference(x, params, final_relu=True)
    assert bool(jnp.allclose(y, y_ref, atol=1e-4, rtol=1e-4)), "streamed fused path mismatch"

    print("KERNEL_OK")
</pallas_src>

<mosaic_0001>
module attributes {stable_mosaic.version = 11 : i64} {
  func.func @_mlp_fused_kernel(%arg0: i32, %arg1: i32, %arg2: memref<8x128xf32, #tpu.memory_space<vmem>>, %arg3: memref<3x128x128xf32, #tpu.memory_space<vmem>>, %arg4: memref<1x1x128xf32, #tpu.memory_space<vmem>>, %arg5: memref<8x128xf32, #tpu.memory_space<vmem>>, %arg6: memref<8x128xf32, #tpu.memory_space<vmem>>) attributes {dimension_semantics = [#tpu.dimension_semantics<parallel>, #tpu.dimension_semantics<arbitrary>], iteration_bounds = array<i64: 1, 3>, scalar_prefetch = 0 : i64, scratch_operands = 1 : i64, tpu.core_type = #tpu.core_type<tc>, window_params = [{transform_indices = @transform_0, window_bounds = array<i64: 8, 128>}, {pipeline_mode = #tpu.pipeline_mode<synchronous>, transform_indices = @transform_1, window_bounds = array<i64: 3, 128, 128>}, {transform_indices = @transform_2, window_bounds = array<i64: 1, 1, 128>}, {transform_indices = @transform_3, window_bounds = array<i64: 8, 128>}]} {
    %c0_i32 = arith.constant 0 : i32
    %0 = arith.cmpi eq, %arg1, %c0_i32 : i32
    %1 = arith.extui %0 : i1 to i32
    %c0_i32_0 = arith.constant 0 : i32
    %2 = arith.cmpi ne, %1, %c0_i32_0 : i32
    scf.if %2 {
      %c0_13 = arith.constant 0 : index
      %c0_14 = arith.constant 0 : index
      %22 = vector.load %arg2[%c0_13, %c0_14] : memref<8x128xf32, #tpu.memory_space<vmem>>, vector<8x128xf32>
      %c0_15 = arith.constant 0 : index
      %c0_16 = arith.constant 0 : index
      %23 = vector.load %arg6[%c0_15, %c0_16] : memref<8x128xf32, #tpu.memory_space<vmem>>, vector<8x128xf32>
      tpu.vector_store %arg6[%c0_15, %c0_16], %22 {strides = array<i32>} : memref<8x128xf32, #tpu.memory_space<vmem>>, vector<8x128xf32>,
    } else {
    }
    %c0 = arith.constant 0 : index
    %c0_1 = arith.constant 0 : index
    %3 = vector.load %arg6[%c0, %c0_1] : memref<8x128xf32, #tpu.memory_space<vmem>>, vector<8x128xf32>
    %c2_i32 = arith.constant 2 : i32
    %4 = arith.cmpi slt, %arg1, %c2_i32 : i32
    %cst = arith.constant 0.000000e+00 : f32
    %cst_2 = arith.constant 0xFF800000 : f32
    %5 = arith.select %4, %cst, %cst_2 : f32
    %6 = vector.broadcast %5 : f32 to vector<8x128xf32>
    %7 = arith.maximumf %3, %6 : vector<8x128xf32>
    %8 = arith.index_cast %arg1 : i32 to index
    %c0_3 = arith.constant 0 : index
    %c0_4 = arith.constant 0 : index
    %9 = vector.load %arg3[%8, %c0_3, %c0_4] : memref<3x128x128xf32, #tpu.memory_space<vmem>>, vector<1x128x128xf32>
    %10 = vector.shape_cast %9 : vector<1x128x128xf32> to vector<128x128xf32>
    %cst_5 = arith.constant dense<0.000000e+00> : vector<8x128xf32>
    %11 = tpu.matmul %7, %10, %cst_5 {dimension_numbers = #tpu.dot_dimension_numbers<[1], [0], [0], [1], [0, 0, 1, 1], [], []>} : vector<8x128xf32>, vector<128x128xf32>, vector<8x128xf32> -> vector<8x128xf32>
    %c0_6 = arith.constant 0 : index
    %c0_7 = arith.constant 0 : index
    %c0_8 = arith.constant 0 : index
    %12 = vector.load %arg4[%c0_6, %c0_7, %c0_8] : memref<1x1x128xf32, #tpu.memory_space<vmem>>, vector<1x1x128xf32>
    %13 = vector.shape_cast %12 : vector<1x1x128xf32> to vector<1x128xf32>
    %14 = vector.broadcast %13 : vector<1x128xf32> to vector<8x128xf32>
    %15 = arith.addf %11, %14 : vector<8x128xf32>
    %c2_i32_9 = arith.constant 2 : i32
    %16 = arith.cmpi slt, %arg1, %c2_i32_9 : i32
    %17 = arith.extui %16 : i1 to i32
    %c0_i32_10 = arith.constant 0 : i32
    %18 = arith.cmpi ne, %17, %c0_i32_10 : i32
    scf.if %18 {
      %c0_13 = arith.constant 0 : index
      %c0_14 = arith.constant 0 : index
      %22 = vector.load %arg6[%c0_13, %c0_14] : memref<8x128xf32, #tpu.memory_space<vmem>>, vector<8x128xf32>
      tpu.vector_store %arg6[%c0_13, %c0_14], %15 {strides = array<i32>} : memref<8x128xf32, #tpu.memory_space<vmem>>, vector<8x128xf32>,
    } else {
    }
    %c2_i32_11 = arith.constant 2 : i32
    %19 = arith.cmpi eq, %arg1, %c2_i32_11 : i32
    %20 = arith.extui %19 : i1 to i32
    %c0_i32_12 = arith.constant 0 : i32
    %21 = arith.cmpi ne, %20, %c0_i32_12 : i32
    scf.if %21 {
      %c0_13 = arith.constant 0 : index
      %c0_14 = arith.constant 0 : index
      %22 = vector.load %arg5[%c0_13, %c0_14] : memref<8x128xf32, #tpu.memory_space<vmem>>, vector<8x128xf32>
      tpu.vector_store %arg5[%c0_13, %c0_14], %15 {strides = array<i32>} : memref<8x128xf32, #tpu.memory_space<vmem>>, vector<8x128xf32>,
    } else {
    }
    return
  }
  func.func @transform_0(%arg0: i32, %arg1: i32) -> (i32, i32) {
    %c0_i32 = arith.constant 0 : i32
    %c0_i32_0 = arith.constant 0 : i32
    return %arg0, %c0_i32 : i32, i32
  }
  func.func @transform_1(%arg0: i32, %arg1: i32) -> (i32, i32, i32) {
    %c0_i32 = arith.constant 0 : i32
    %c0_i32_0 = arith.constant 0 : i32
    %c0_i32_1 = arith.constant 0 : i32
    %c0_i32_2 = arith.constant 0 : i32
    return %c0_i32, %c0_i32_0, %c0_i32_1 : i32, i32, i32
  }
  func.func @transform_2(%arg0: i32, %arg1: i32) -> (i32, i32, i32) {
    %c0_i32 = arith.constant 0 : i32
    %c0_i32_0 = arith.constant 0 : i32
    %c0_i32_1 = arith.constant 0 : i32
    return %arg1, %c0_i32, %c0_i32_0 : i32, i32, i32
  }
  func.func @transform_3(%arg0: i32, %arg1: i32) -> (i32, i32) {
    %c0_i32 = arith.constant 0 : i32
    %c0_i32_0 = arith.constant 0 : i32
    return %arg0, %c0_i32 : i32, i32
  }
}

</mosaic_0001>

<llo_original>
// kernel: tpu_custom_call.1
$region0: #{tpu_custom_call.1}
  #allocation0 [shape = 'u32[]', space=smem, size = 0x4, offset = 0x4, fixed_abs, tag = 'smem constant byte address 0x4 - core index']
  #allocation1 [shape = 'u32[72,128]{1,0:T(1,128)}', space=vmem, size = 0x9000, scoped, tag = 'internal scratch']
  #allocation2 [shape = 'f32[8,128]{1,0:T(8,128)}', space=vmem, size = 0x1000, scoped, tag = 'scratch operand']
  %s0 = inlined_call_operand.hbm [shape: f32[8,128], index: 0, kind: input, shape index: {}]
  %s1 = inlined_call_operand.hbm [shape: f32[3,128,128], index: 1, kind: input, shape index: {}]
  %s2 = inlined_call_operand.hbm [shape: f32[3,1,128], index: 2, kind: input, shape index: {}]
  %s3 = inlined_call_operand.hbm [shape: f32[8,128], index: 3, kind: output, shape index: {}]
  %s4 = sld [smem:[#allocation0]]
  $region69: #{tpu_custom_call.1} parent=0
    _
  %s6 = ssub.s32 1, %s4
  %s7 = scalar_select 0, %s6, %s4
  $region1: #{tpu_custom_call.1} parent=0
    #allocation3 [shape = 'u8[4096]{0}', space=vmem, size = 0x1000, scoped, tag = 'input window, operand 0, single buffered']
    #allocation4 [shape = 's32[2]{0}', space=sflag, size = 0x8, scoped, tag = 'scoped memory for tpu_custom_call.1']
    #allocation5 [shape = 's32[2]{0}', space=sflag, size = 0x8, scoped, tag = 'scoped memory for tpu_custom_call.1']
    #allocation6 [shape = 'u8[196608]{0}', space=vmem, size = 0x30000, scoped, tag = 'input window, operand 1, single buffered']
    #allocation7 [shape = 's32[1]{0}', space=sflag, size = 0x4, scoped, tag = 'scoped memory for tpu_custom_call.1']
    #allocation8 [shape = 'u8[1024]{0}', space=vmem, size = 0x400, scoped, tag = 'input window, operand 2']
    #allocation9 [shape = 'u8[4096]{0}', space=vmem, size = 0x1000, scoped, tag = 'output window, operand 0, single buffered']
    %8 = vsyncpa [#allocation4], 0
    %9 = vsyncpa [#allocation7], 0
    %10 = vsyncpa [#allocation5], 0
    loop: start=0, step=1, limit=5
    $region2: #{tpu_custom_call.1} parent=1 // loop_pre_header
      _
    $region3: #{tpu_custom_call.1} parent=1 // loop_header
      %s12 = sphi 0, %s16
      %p13 = scmp.ge.s32.totalorder %s12, 5
      %s19 = sphi 0, %s31
      %s20 = sphi 0, %s27
      %s21 = sphi 0, %s19
      %s22 = sphi 0, %s20
      %s23 = sphi 0, %s21
      %s24 = sphi 0, %s22
      %s34 = sphi 0, %s36
      %s37 = sphi 0, %s34
      %s38 = sphi 0, %s37
      %s54 = sphi 0, %s38
      %s58 = sphi 0, %s58
      %s60 = sphi 0, %s58
      %s61 = sphi 0, %s60
      %s75 = sphi 0, %s61
      %s81 = sphi 0, %s83
      %s84 = sphi 0, %s81
      %s85 = sphi 0, %s84
      %s101 = sphi 0, %s85
      %s107 = sphi 0, %s109
      %s110 = sphi 0, %s107
      %s111 = sphi 0, %s110
      %s127 = sphi 0, %s111
    $region4: #{tpu_custom_call.1} parent=1 // loop_header_branch
      %15 = sbr.rel (%p13) target = $region8
    $region5: #{tpu_custom_call.1} parent=1 // loop_body
      %s17 = ssub.s32 %s12, 1
      %s18 = ssub.s32 %s12, 2
      %s25 = sadd.s32 1, %s20
      %p26 = scmp.ge.s32.totalorder %s25, 3
      %s27 = scalar_select %p26, 0, %s25
      %s28 = sadd.s32 1, %s19
      %s29 = scalar_select %p26, %s28, %s19
      %p30 = scmp.ge.s32.totalorder %s29, 1
      %s31 = scalar_select %p30, 0, %s29
      %s32 = ssub.s32 %s19, %s31
      %p33 = scmp.eq.s32.totalorder %s32, 0
      %s35 = sadd.s32 %s34, 1
      %s36 = scalar_select %p33, %s34, %s35
      %p39 = pneg %p33
      %p40 = scmp.eq.s32.totalorder %s12, 2
      %p41 = por %p39, %p40
      %p42 = scmp.ne.s32.totalorder %s34, %s37
      %p43 = scmp.eq.s32.totalorder %s12, 0
      %p44 = por %p42, %p43
      %p45 = scmp.ne.s32.totalorder %s34, %s37
      %p46 = scmp.eq.s32.totalorder %s17, 2
      %p47 = por %p45, %p46
      %p48 = scmp.ne.s32.totalorder %s37, %s38
      %p49 = scmp.eq.s32.totalorder %s17, 0
      %p50 = por %p48, %p49
      %p51 = scmp.ne.s32.totalorder %s37, %s38
      %p52 = scmp.eq.s32.totalorder %s18, 2
      %p53 = por %p51, %p52
      %p55 = scmp.ne.s32.totalorder %s38, %s54
      %p56 = scmp.eq.s32.totalorder %s18, 0
      %p57 = por %p55, %p56
      %s59 = sadd.s32 %s58, 1
      %p62 = scmp.eq.s32.totalorder %s12, 2
      %p63 = scmp.ne.s32.totalorder %s58, %s60
      %p64 = scmp.eq.s32.totalorder %s12, 0
      %p65 = por %p63, %p64
      %p66 = scmp.ne.s32.totalorder %s58, %s60
      %p67 = scmp.eq.s32.totalorder %s17, 2
      %p68 = por %p66, %p67
      %p69 = scmp.ne.s32.totalorder %s60, %s61
      %p70 = scmp.eq.s32.totalorder %s17, 0
      %p71 = por %p69, %p70
      %p72 = scmp.ne.s32.totalorder %s60, %s61
      %p73 = scmp.eq.s32.totalorder %s18, 2
      %p74 = por %p72, %p73
      %p76 = scmp.ne.s32.totalorder %s61, %s75
      %p77 = scmp.eq.s32.totalorder %s18, 0
      %p78 = por %p76, %p77
      %s79 = ssub.s32 %s20, %s27
      %p80 = scmp.eq.s32.totalorder %s79, 0
      %s82 = sadd.s32 %s81, 1
      %s83 = scalar_select %p80, %s81, %s82
      %p86 = pneg %p80
      %p87 = scmp.eq.s32.totalorder %s12, 2
      %p88 = por %p86, %p87
      %p89 = scmp.ne.s32.totalorder %s81, %s84
      %p90 = scmp.eq.s32.totalorder %s12, 0
      %p91 = por %p89, %p90
      %p92 = scmp.ne.s32.totalorder %s81, %s84
      %p93 = scmp.eq.s32.totalorder %s17, 2
      %p94 = por %p92, %p93
      %p95 = scmp.ne.s32.totalorder %s84, %s85
      %p96 = scmp.eq.s32.totalorder %s17, 0
      %p97 = por %p95, %p96
      %p98 = scmp.ne.s32.totalorder %s84, %s85
      %p99 = scmp.eq.s32.totalorder %s18, 2
      %p100 = por %p98, %p99
      %p102 = scmp.ne.s32.totalorder %s85, %s101
      %p103 = scmp.eq.s32.totalorder %s18, 0
      %p104 = por %p102, %p103
      %s105 = ssub.s32 %s19, %s31
      %p106 = scmp.eq.s32.totalorder %s105, 0
      %s108 = sadd.s32 %s107, 1
      %s109 = scalar_select %p106, %s107, %s108
      %p112 = pneg %p106
      %p113 = scmp.eq.s32.totalorder %s12, 2
      %p114 = por %p112, %p113
      %p115 = scmp.ne.s32.totalorder %s107, %s110
      %p116 = scmp.eq.s32.totalorder %s12, 0
      %p117 = por %p115, %p116
      %p118 = scmp.ne.s32.totalorder %s107, %s110
      %p119 = scmp.eq.s32.totalorder %s17, 2
      %p120 = por %p118, %p119
      %p121 = scmp.ne.s32.totalorder %s110, %s111
      %p122 = scmp.eq.s32.totalorder %s17, 0
      %p123 = por %p121, %p122
      %p124 = scmp.ne.s32.totalorder %s110, %s111
      %p125 = scmp.eq.s32.totalorder %s18, 2
      %p126 = por %p124, %p125
      %p128 = scmp.ne.s32.totalorder %s111, %s127
      %p129 = scmp.eq.s32.totalorder %s18, 0
      %p130 = por %p128, %p129
      %p131 = scmp.le.s32.totalorder 1, %s12
      %p132 = scmp.lt.s32.totalorder %s12, 4
      %p133 = pnand %p131, %p132
      %p134 = pneg %p133
      // Predicated region
      $region9: #{tpu_custom_call.1} parent=5 // pred_check
        _
      $region10: #{tpu_custom_call.1} parent=5 // pred_check_branch
        %136 = sbr.rel (%p133) target = $region12
      $region11: #{tpu_custom_call.1} parent=5 // pred_region
        %s137 = ssub.s32 %s12, 1
        // Predicated region
        $region13: #{tpu_custom_call.1} parent=11 // pred_check
          %p138 = pneg %p50
        $region14: #{tpu_custom_call.1} parent=11 // pred_check_branch
          %140 = sbr.rel (%p138) target = $region16
        $region15: #{tpu_custom_call.1} parent=11 // pred_region
          %142 = vsyncadd [#allocation4], 0
          %s143 = smul.addr %s21, 8
          %s144 = scalar_lea.hbm %s0, %s143
          %s146 = sshll.u32 %s144, 4
          %s147 = int_to_ptr.hbm [resolvable:$true] %s146
          %s148 = sshll.u32 [#allocation3], 4
          %s149 = int_to_ptr.vmem [resolvable:$true] %s148
          %151 = dma.hbm_to_vmem [thread:$0]  %s147, 128, %s149, [#allocation4]
        $region16: #{tpu_custom_call.1} parent=11 // pred_fallthru
          _
        // Predicated region
        $region17: #{tpu_custom_call.1} parent=11 // pred_check
          %p152 = pneg %p71
        $region18: #{tpu_custom_call.1} parent=11 // pred_check_branch
          %154 = sbr.rel (%p152) target = $region20
        $region19: #{tpu_custom_call.1} parent=11 // pred_region
          %156 = vsyncadd [#allocation7], 0
          %s157 = sshll.u32 %s1, 4
          %s158 = int_to_ptr.hbm [resolvable:$true] %s157
          %s159 = sshll.u32 [#allocation6], 4
          %s160 = int_to_ptr.vmem [resolvable:$true] %s159
          %165 = dma.hbm_to_vmem [thread:$0]  %s158, 6144, %s160, [#allocation7], 128, 128, 8
        $region20: #{tpu_custom_call.1} parent=11 // pred_fallthru
          _
      $region12: #{tpu_custom_call.1} parent=5 // pred_fallthru
        _
      %p166 = scmp.lt.s32.totalorder %s12, 3
      // Predicated region
      $region21: #{tpu_custom_call.1} parent=5 // pred_check
        %p167 = pneg %p166
      $region22: #{tpu_custom_call.1} parent=5 // pred_check_branch
        %169 = sbr.rel (%p167) target = $region24
      $region23: #{tpu_custom_call.1} parent=5 // pred_region
        // Predicated region
        $region25: #{tpu_custom_call.1} parent=23 // pred_check
          %p170 = pneg %p91
        $region26: #{tpu_custom_call.1} parent=23 // pred_check_branch
          %172 = sbr.rel (%p170) target = $region28
        $region27: #{tpu_custom_call.1} parent=23 // pred_region
          %s173 = sand.u32 %s12, 1
          %s174 = scalar_lea.sflag [#allocation4], %s173
          %s175 = sand.u32 %s81, 1
          %s176 = scalar_lea.vmem [#allocation8], %s175
          %178 = vsyncadd %s174, 0
          %s179 = scalar_lea.hbm %s2, %s20
          %s181 = sshll.u32 %s179, 4
          %s182 = int_to_ptr.hbm [resolvable:$true] %s181
          %s183 = sshll.u32 %s176, 4
          %s184 = int_to_ptr.vmem [resolvable:$true] %s183
          %186 = dma.hbm_to_vmem [thread:$0]  %s182, 16, %s184, %s174
        $region28: #{tpu_custom_call.1} parent=23 // pred_fallthru
          _
      $region24: #{tpu_custom_call.1} parent=5 // pred_fallthru
        _
      %p187 = scmp.le.s32.totalorder 1, %s12
      %p188 = scmp.lt.s32.totalorder %s12, 4
      %p189 = pnand %p187, %p188
      %p190 = pneg %p189
      // Predicated region
      $region29: #{tpu_custom_call.1} parent=5 // pred_check
        _
      $region30: #{tpu_custom_call.1} parent=5 // pred_check_branch
        %192 = sbr.rel (%p189) target = $region32
      $region31: #{tpu_custom_call.1} parent=5 // pred_region
        %s193 = ssub.s32 %s12, 1
        // Predicated region
        $region33: #{tpu_custom_call.1} parent=31 // pred_check
          %p194 = pneg %p50
        $region34: #{tpu_custom_call.1} parent=31 // pred_check_branch
          %196 = sbr.rel (%p194) target = $region36
        $region35: #{tpu_custom_call.1} parent=31 // pred_region
          %198 = dma.done [#allocation4], 128
        $region36: #{tpu_custom_call.1} parent=31 // pred_fallthru
          _
        // Predicated region
        $region37: #{tpu_custom_call.1} parent=31 // pred_check
          %p199 = pneg %p71
        $region38: #{tpu_custom_call.1} parent=31 // pred_check_branch
          %201 = sbr.rel (%p199) target = $region40
        $region39: #{tpu_custom_call.1} parent=31 // pred_region
          %203 = dma.done [#allocation7], 6144
        $region40: #{tpu_custom_call.1} parent=31 // pred_fallthru
          _
        %s204 = sand.u32 %s17, 1
        %s205 = scalar_lea.sflag [#allocation4], %s204
        %s206 = sand.u32 %s84, 1
        %s207 = scalar_lea.vmem [#allocation8], %s206
        // Predicated region
        $region41: #{tpu_custom_call.1} parent=31 // pred_check
          %p208 = pneg %p97
        $region42: #{tpu_custom_call.1} parent=31 // pred_check_branch
          %210 = sbr.rel (%p208) target = $region44
        $region43: #{tpu_custom_call.1} parent=31 // pred_region
          %212 = dma.done %s205, 16
        $region44: #{tpu_custom_call.1} parent=31 // pred_fallthru
          _
        %p213 = pneg %p50
        %p214 = pneg %p47
        %p215 = pneg %p71
        %p216 = pneg %p68
        %s217 = sand.u32 %s17, 1
        %s218 = scalar_lea.sflag [#allocation4], %s217
        %s219 = sand.u32 %s84, 1
        %s220 = scalar_lea.vmem [#allocation8], %s219
        %p221 = pneg %p97
        %p222 = pneg %p94
        %p223 = pneg %p123
        %p224 = pneg %p120
        %p225 = scmp.eq.s32.totalorder %s22, 0
        // Predicated region
        $region45: #{tpu_custom_call.1} parent=31 // pred_check
          %p226 = pneg %p225
        $region46: #{tpu_custom_call.1} parent=31 // pred_check_branch
          %228 = sbr.rel (%p226) target = $region48
        $region47: #{tpu_custom_call.1} parent=31 // pred_region
          %v229 = vld [vmem:[#allocation3] sm:$0xff]
          %230 = vst [vmem:[#allocation2] sm:$0xff] %v229
        $region48: #{tpu_custom_call.1} parent=31 // pred_fallthru
          _
        %v231 = vld [vmem:[#allocation2] sm:$0xff]
        %p232 = scmp.lt.s32.totalorder %s22, 2
        %s233 = scalar_select %p232, 0.0, -inf
        %v234 = vstv %s233
        %v235 = vmax.f32 %v231, %v234
        %s236 = smul.u32 %s22, 128
        %s237 = scalar_lea.vmem [#allocation6], %s236
        %v238 = vld [vmem:[%s237] sm:$0xff]
        %v239 = vld [vmem:[%s237 + $0x8] sm:$0xff]
        %v240 = vld [vmem:[%s237 + $0x10] sm:$0xff]
        %v241 = vld [vmem:[%s237 + $0x18] sm:$0xff]
        %v242 = vld [vmem:[%s237 + $0x20] sm:$0xff]
        %v243 = vld [vmem:[%s237 + $0x28] sm:$0xff]
        %v244 = vld [vmem:[%s237 + $0x30] sm:$0xff]
        %v245 = vld [vmem:[%s237 + $0x38] sm:$0xff]
        %v246 = vld [vmem:[%s237 + $0x40] sm:$0xff]
        %v247 = vld [vmem:[%s237 + $0x48] sm:$0xff]
        %v248 = vld [vmem:[%s237 + $0x50] sm:$0xff]
        %v249 = vld [vmem:[%s237 + $0x58] sm:$0xff]
        %v250 = vld [vmem:[%s237 + $0x60] sm:$0xff]
        %v251 = vld [vmem:[%s237 + $0x68] sm:$0xff]
        %v252 = vld [vmem:[%s237 + $0x70] sm:$0xff]
        %v253 = vld [vmem:[%s237 + $0x78] sm:$0xff]
        %v254 = vld [vmem:[%s207] sm:$0x1]
        %v256 = vperm.slane %v254, 0
        %258 = vmatpush.msra.mxu0 %v253
        %259 = vmatpush.msra.mxu0 %v252
        %260 = vmatpush.msra.mxu0 %v251
        %261 = vmatpush.msra.mxu0 %v250
        %262 = vmatpush.msra.mxu0 %v249
        %263 = vmatpush.msra.mxu0 %v248
        %264 = vmatpush.msra.mxu0 %v247
        %265 = vmatpush.msra.mxu0 %v246
        %266 = vmatpush.msra.mxu0 %v245
        %267 = vmatpush.msra.mxu0 %v244
        %268 = vmatpush.msra.mxu0 %v243
        %269 = vmatpush.msra.mxu0 %v242
        %270 = vmatpush.msra.mxu0 %v241
        %271 = vmatpush.msra.mxu0 %v240
        %272 = vmatpush.msra.mxu0 %v239
        %273 = vmatpush.msra.mxu0 %v238
        %274 = vmatmul.f32.gmra.mxu0 %v235
        %v275 = vpop.f32.mrf.mxu0
        %v276 = vadd.f32 %v256, %v275
        %277 = vdwg.mxu0
        // Predicated region
        $region49: #{tpu_custom_call.1} parent=31 // pred_check
          %p278 = pneg %p232
        $region50: #{tpu_custom_call.1} parent=31 // pred_check_branch
          %280 = sbr.rel (%p278) target = $region52
        $region51: #{tpu_custom_call.1} parent=31 // pred_region
          %281 = vst [vmem:[#allocation2] sm:$0xff] %v276
        $region52: #{tpu_custom_call.1} parent=31 // pred_fallthru
          _
        %p282 = scmp.eq.s32.totalorder %s22, 2
        // Predicated region
        $region53: #{tpu_custom_call.1} parent=31 // pred_check
          %p283 = pneg %p282
        $region54: #{tpu_custom_call.1} parent=31 // pred_check_branch
          %285 = sbr.rel (%p283) target = $region56
        $region55: #{tpu_custom_call.1} parent=31 // pred_region
          %286 = vst [vmem:[#allocation9] sm:$0xff] %v276
        $region56: #{tpu_custom_call.1} parent=31 // pred_fallthru
          _
        // Predicated region
        $region57: #{tpu_custom_call.1} parent=31 // pred_check
          %p287 = pneg %p120
        $region58: #{tpu_custom_call.1} parent=31 // pred_check_branch
          %289 = sbr.rel (%p287) target = $region60
        $region59: #{tpu_custom_call.1} parent=31 // pred_region
          %291 = vsyncadd [#allocation5], 0
          %s292 = smul.addr %s21, 8
          %s293 = scalar_lea.hbm %s3, %s292
          %s295 = sshll.u32 [#allocation9], 4
          %s296 = int_to_ptr.vmem [resolvable:$true] %s295
          %s297 = sshll.u32 %s293, 4
          %s298 = int_to_ptr.hbm [resolvable:$true] %s297
          %300 = dma.vmem_to_hbm [thread:$0]  %s296, 128, %s298, [#allocation5]
        $region60: #{tpu_custom_call.1} parent=31 // pred_fallthru
          _
        // Predicated region
        $region61: #{tpu_custom_call.1} parent=31 // pred_check
          %p301 = pneg %p120
        $region62: #{tpu_custom_call.1} parent=31 // pred_check_branch
          %303 = sbr.rel (%p301) target = $region64
        $region63: #{tpu_custom_call.1} parent=31 // pred_region
          %305 = dma.done [#allocation5], 128
        $region64: #{tpu_custom_call.1} parent=31 // pred_fallthru
          _
      $region32: #{tpu_custom_call.1} parent=5 // pred_fallthru
        _
      %p306 = scmp.le.s32.totalorder 2, %s12
      // Predicated region
      $region65: #{tpu_custom_call.1} parent=5 // pred_check
        %p307 = pneg %p306
      $region66: #{tpu_custom_call.1} parent=5 // pred_check_branch
        %309 = sbr.rel (%p307) target = $region68
      $region67: #{tpu_custom_call.1} parent=5 // pred_region
        %s310 = ssub.s32 %s12, 2
      $region68: #{tpu_custom_call.1} parent=5 // pred_fallthru
        _
    $region6: #{tpu_custom_call.1} parent=1 // loop_footer
      %s16 = sadd.s32 1, %s12
    $region7: #{tpu_custom_call.1} parent=1 // loop_footer_branch
      %11 = sbr.rel target = $region3
    $region8: #{tpu_custom_call.1} parent=1 // loop_exit
      _
    %311 = vsyncpa [#allocation4], 1
    %s312 = scalar_lea.sflag [#allocation4], 1
    %313 = vsyncpa %s312, 1
    %314 = vsyncpa [#allocation7], 1
    %315 = vsyncpa [#allocation5], 1
    %s316 = scalar_lea.sflag [#allocation5], 1
    %317 = vsyncpa %s316, 1

</llo_original>
